<compile_context>
chip_gen: v7x
topology: tpu7x:2x2x1
jax: 0.10.0
libtpu: 0.0.40
codegen_flags: <defaults>
</compile_context>

<pallas_src>
import jax
import jax.numpy as jnp
from jax.experimental import pallas as pl
from jax.experimental.pallas import tpu as pltpu

F_IN = 40
H1, H2, N_CLS = 200, 100, 2
H1P, H2P = 256, 128          # hidden dims zero-padded to multiples of 128


def evar_kernel(x_ref, w1_ref, b1_ref, w2_ref, b2_ref, wd_ref, bd_ref, o_ref):
    # x_ref : [TB, F_IN]  (batch on sublanes, features on lanes)
    # w1_ref: [F_IN, H1P] bf16,  b1_ref: [1, H1P] f32
    # w2_ref: [H1P, H2P]  bf16,  b2_ref: [1, H2P] f32
    # wd_ref: [1, H2P]    f32 (= pad(w3[:,1] - w3[:,0])),  bd_ref: [1, 1] f32
    # o_ref : [TB, 2]  (col 0 = P(class 0), col 1 = P(class 1))
    x = x_ref[...].astype(jnp.bfloat16)

    # Linear(40, 200) + Hardtanh   (zero-padded columns stay exactly 0)
    h1 = jnp.dot(x, w1_ref[...], preferred_element_type=jnp.float32) + b1_ref[...]
    h1 = jnp.clip(h1, -1.0, 1.0)

    # Linear(200, 100) + Hardtanh
    h2 = jnp.dot(h1.astype(jnp.bfloat16), w2_ref[...],
                 preferred_element_type=jnp.float32) + b2_ref[...]
    h2 = jnp.clip(h2, -1.0, 1.0)

    # Linear(100, 2) + Softmax over 2 classes == sigmoid of the logit diff.
    d = jnp.sum(h2 * wd_ref[...], axis=-1, keepdims=True) + bd_ref[...]   # [TB, 1]

    # probs[:, 0] = sigmoid(-d), probs[:, 1] = sigmoid(+d)
    cols = jax.lax.broadcasted_iota(jnp.int32, (1, N_CLS), 1)
    signs = (cols * 2 - 1).astype(jnp.float32)                            # [-1, +1]
    probs = 1.0 / (1.0 + jnp.exp(-d * signs))                             # [TB, 2]
    o_ref[...] = probs.astype(o_ref.dtype)


def _round_up(n, m):
    return ((n + m - 1) // m) * m


def prepare_kernel_params(params):
    """Convert x@W-layout params to the padded kernel layout (bf16 matmul weights)."""
    w1, b1, w2, b2, w3, b3 = params
    f32, bf16 = jnp.float32, jnp.bfloat16
    w1p = jnp.zeros((F_IN, H1P), bf16).at[:, :H1].set(w1.astype(bf16))
    b1p = jnp.zeros((1, H1P), f32).at[:, :H1].set(b1.reshape(1, H1).astype(f32))
    w2p = jnp.zeros((H1P, H2P), bf16).at[:H1, :H2].set(w2.astype(bf16))
    b2p = jnp.zeros((1, H2P), f32).at[:, :H2].set(b2.reshape(1, H2).astype(f32))
    # softmax([l0, l1])[1] == sigmoid(l1 - l0); only the difference is needed.
    wd = jnp.zeros((1, H2P), f32).at[0, :H2].set((w3[:, 1] - w3[:, 0]).astype(f32))
    bd = (b3.reshape(N_CLS)[1] - b3.reshape(N_CLS)[0]).reshape(1, 1).astype(f32)
    return w1p, b1p, w2p, b2p, wd, bd


def evar_forward(x, params, *, batch_tile=2048):
    """x: [B, 40] float32 -> [B, 2] float32 (softmax probabilities)."""
    B, f_in = x.shape
    assert f_in == F_IN
    w1p, b1p, w2p, b2p, wd, bd = prepare_kernel_params(params)

    # Batch tiling: one full-batch block for B <= batch_tile (no padding, no
    # extra pass over x).  For larger batches, tiles of up to `batch_tile`
    # rows, sized so the grid has >= 4 steps (>= 2 per TensorCore on v7x) to
    # keep the DMA pipeline overlapped; Pallas masks the ragged last block.
    if B <= batch_tile:
        tile = B
    else:
        n_steps = max(pl.cdiv(B, batch_tile), 4)
        tile = min(_round_up(pl.cdiv(B, n_steps), 8), batch_tile)
    grid = (pl.cdiv(B, tile),)

    def full(arr):
        return pl.BlockSpec(arr.shape, lambda i: (0,) * arr.ndim)

    out = pl.pallas_call(
        evar_kernel,
        out_shape=jax.ShapeDtypeStruct((B, N_CLS), jnp.float32),
        grid_spec=pltpu.PrefetchScalarGridSpec(
            num_scalar_prefetch=0,
            grid=grid,
            in_specs=[
                pl.BlockSpec((tile, F_IN), lambda i: (i, 0)),   # x tile
                full(w1p), full(b1p),
                full(w2p), full(b2p),
                full(wd), full(bd),
            ],
            out_specs=pl.BlockSpec((tile, N_CLS), lambda i: (i, 0)),
        ),
        compiler_params=pltpu.CompilerParams(
            dimension_semantics=("parallel",),
            vmem_limit_bytes=32 * 1024 * 1024,
        ),
    )(x, w1p, b1p, w2p, b2p, wd, bd)
    return out


def init_params(key):
    """Deterministic init mimicking nn.Linear.reset_parameters (U(-1/sqrt(fan_in), +1/sqrt(fan_in)))."""
    dims = [(F_IN, H1), (H1, H2), (H2, N_CLS)]
    params = []
    for li, (fan_in, fan_out) in enumerate(dims):
        kw, kb = jax.random.split(jax.random.fold_in(key, li))
        bound = 1.0 / jnp.sqrt(jnp.float32(fan_in))
        w = jax.random.uniform(kw, (fan_in, fan_out), jnp.float32, -bound, bound)
        b = jax.random.uniform(kb, (1, fan_out), jnp.float32, -bound, bound)
        params.extend([w, b])
    return tuple(params)


def evar_reference(x, params):
    """Plain-JAX f32 reference of the same forward pass."""
    w1, b1, w2, b2, w3, b3 = params
    h1 = jnp.clip(x @ w1 + b1, -1.0, 1.0)
    h2 = jnp.clip(h1 @ w2 + b2, -1.0, 1.0)
    logits = h2 @ w3 + b3
    return jax.nn.softmax(logits, axis=-1)


def _check(out, ref, tag):
    # bf16 matmul operands with f32 accumulation -> a few e-3 abs error on the
    # probabilities; 2e-2 gives comfortable margin.
    assert out.shape == ref.shape, f"{tag}: shape mismatch"
    assert bool(jnp.all(jnp.isfinite(out))), f"{tag}: non-finite output"
    assert jnp.allclose(out, ref, atol=2e-2, rtol=0.0), f"{tag}: mismatch vs reference"
    assert jnp.allclose(jnp.sum(out, axis=-1), 1.0, atol=1e-5), f"{tag}: rows must sum to 1"


if __name__ == "__main__":
    key = jax.random.PRNGKey(0)
    k_x, k_p, k_x2 = jax.random.split(key, 3)

    params = init_params(k_p)

    # Small batch: single full-batch block.
    B = 8
    x = jax.random.normal(k_x, (B, F_IN), jnp.float32)
    out = jax.block_until_ready(evar_forward(x, params))
    _check(out, evar_reference(x, params), "B=8")

    # Medium batch, still one block (no padding, B not a multiple of 8).
    B2 = 300
    x2 = jax.random.normal(k_x2, (B2, F_IN), jnp.float32)
    out2 = jax.block_until_ready(evar_forward(x2, params))
    ref2 = evar_reference(x2, params)
    _check(out2, ref2, "B=300")

    # Same batch forced through the multi-step grid + ragged-last-block path.
    out3 = jax.block_until_ready(evar_forward(x2, params, batch_tile=128))
    _check(out3, ref2, "B=300 tiled")

    print("KERNEL_OK")
</pallas_src>

<mosaic_0001>
module attributes {stable_mosaic.version = 11 : i64} {
  func.func @evar_kernel(%arg0: i32, %arg1: memref<8x40xf32, #tpu.memory_space<vmem>>, %arg2: memref<40x256xbf16, #tpu.memory_space<vmem>>, %arg3: memref<1x256xf32, #tpu.memory_space<vmem>>, %arg4: memref<256x128xbf16, #tpu.memory_space<vmem>>, %arg5: memref<1x128xf32, #tpu.memory_space<vmem>>, %arg6: memref<1x128xf32, #tpu.memory_space<vmem>>, %arg7: memref<1x1xf32, #tpu.memory_space<vmem>>, %arg8: memref<8x2xf32, #tpu.memory_space<vmem>>) attributes {dimension_semantics = [#tpu.dimension_semantics<parallel>], iteration_bounds = array<i64: 1>, scalar_prefetch = 0 : i64, scratch_operands = 0 : i64, tpu.core_type = #tpu.core_type<tc>, window_params = [{transform_indices = @transform_0, window_bounds = array<i64: 8, 40>}, {pipeline_mode = #tpu.pipeline_mode<synchronous>, transform_indices = @transform_1, window_bounds = array<i64: 40, 256>}, {pipeline_mode = #tpu.pipeline_mode<synchronous>, transform_indices = @transform_2, window_bounds = array<i64: 1, 256>}, {pipeline_mode = #tpu.pipeline_mode<synchronous>, transform_indices = @transform_3, window_bounds = array<i64: 256, 128>}, {pipeline_mode = #tpu.pipeline_mode<synchronous>, transform_indices = @transform_4, window_bounds = array<i64: 1, 128>}, {pipeline_mode = #tpu.pipeline_mode<synchronous>, transform_indices = @transform_5, window_bounds = array<i64: 1, 128>}, {pipeline_mode = #tpu.pipeline_mode<synchronous>, transform_indices = @transform_6, window_bounds = array<i64: 1, 1>}, {transform_indices = @transform_7, window_bounds = array<i64: 8, 2>}]} {
    %c0 = arith.constant 0 : index
    %c0_0 = arith.constant 0 : index
    %0 = vector.load %arg1[%c0, %c0_0] : memref<8x40xf32, #tpu.memory_space<vmem>>, vector<8x40xf32>
    %1 = arith.truncf %0 : vector<8x40xf32> to vector<8x40xbf16>
    %c0_1 = arith.constant 0 : index
    %c0_2 = arith.constant 0 : index
    %2 = vector.load %arg2[%c0_1, %c0_2] : memref<40x256xbf16, #tpu.memory_space<vmem>>, vector<40x256xbf16>
    %cst = arith.constant dense<0.000000e+00> : vector<8x256xf32>
    %3 = tpu.matmul %1, %2, %cst {dimension_numbers = #tpu.dot_dimension_numbers<[1], [0], [0], [1], [0, 0, 1, 1], [], []>} : vector<8x40xbf16>, vector<40x256xbf16>, vector<8x256xf32> -> vector<8x256xf32>
    %c0_3 = arith.constant 0 : index
    %c0_4 = arith.constant 0 : index
    %4 = vector.load %arg3[%c0_3, %c0_4] : memref<1x256xf32, #tpu.memory_space<vmem>>, vector<1x256xf32>
    %5 = vector.broadcast %4 : vector<1x256xf32> to vector<8x256xf32>
    %6 = arith.addf %3, %5 : vector<8x256xf32>
    %cst_5 = arith.constant -1.000000e+00 : f32
    %cst_6 = arith.constant 1.000000e+00 : f32
    %7 = vector.broadcast %cst_5 : f32 to vector<8x256xf32>
    %8 = arith.maximumf %7, %6 : vector<8x256xf32>
    %9 = vector.broadcast %cst_6 : f32 to vector<8x256xf32>
    %10 = arith.minimumf %9, %8 : vector<8x256xf32>
    %11 = arith.truncf %10 : vector<8x256xf32> to vector<8x256xbf16>
    %c0_7 = arith.constant 0 : index
    %c0_8 = arith.constant 0 : index
    %12 = vector.load %arg4[%c0_7, %c0_8] : memref<256x128xbf16, #tpu.memory_space<vmem>>, vector<256x128xbf16>
    %cst_9 = arith.constant dense<0.000000e+00> : vector<8x128xf32>
    %13 = tpu.matmul %11, %12, %cst_9 {dimension_numbers = #tpu.dot_dimension_numbers<[1], [0], [0], [1], [0, 0, 1, 1], [], []>} : vector<8x256xbf16>, vector<256x128xbf16>, vector<8x128xf32> -> vector<8x128xf32>
    %c0_10 = arith.constant 0 : index
    %c0_11 = arith.constant 0 : index
    %14 = vector.load %arg5[%c0_10, %c0_11] : memref<1x128xf32, #tpu.memory_space<vmem>>, vector<1x128xf32>
    %15 = vector.broadcast %14 : vector<1x128xf32> to vector<8x128xf32>
    %16 = arith.addf %13, %15 : vector<8x128xf32>
    %cst_12 = arith.constant -1.000000e+00 : f32
    %cst_13 = arith.constant 1.000000e+00 : f32
    %17 = vector.broadcast %cst_12 : f32 to vector<8x128xf32>
    %18 = arith.maximumf %17, %16 : vector<8x128xf32>
    %19 = vector.broadcast %cst_13 : f32 to vector<8x128xf32>
    %20 = arith.minimumf %19, %18 : vector<8x128xf32>
    %c0_14 = arith.constant 0 : index
    %c0_15 = arith.constant 0 : index
    %21 = vector.load %arg6[%c0_14, %c0_15] : memref<1x128xf32, #tpu.memory_space<vmem>>, vector<1x128xf32>
    %22 = vector.broadcast %21 : vector<1x128xf32> to vector<8x128xf32>
    %23 = arith.mulf %20, %22 : vector<8x128xf32>
    %cst_16 = arith.constant dense<0.000000e+00> : vector<8xf32>
    %24 = vector.multi_reduction <add>, %23, %cst_16 [1] : vector<8x128xf32> to vector<8xf32>
    %25 = vector.shape_cast %24 : vector<8xf32> to vector<8x1xf32>
    %c0_17 = arith.constant 0 : index
    %c0_18 = arith.constant 0 : index
    %26 = vector.load %arg7[%c0_17, %c0_18] : memref<1x1xf32, #tpu.memory_space<vmem>>, vector<1x1xf32>
    %27 = vector.broadcast %26 : vector<1x1xf32> to vector<8x1xf32>
    %28 = arith.addf %25, %27 : vector<8x1xf32>
    %29 = tpu.iota {dimensions = array<i32: 1>} : vector<1x2xi32>
    %c2_i32 = arith.constant 2 : i32
    %30 = vector.broadcast %c2_i32 : i32 to vector<1x2xi32>
    %31 = arith.muli %29, %30 : vector<1x2xi32>
    %c1_i32 = arith.constant 1 : i32
    %32 = vector.broadcast %c1_i32 : i32 to vector<1x2xi32>
    %33 = arith.subi %31, %32 : vector<1x2xi32>
    %34 = arith.sitofp %33 : vector<1x2xi32> to vector<1x2xf32>
    %cst_19 = arith.constant 0.000000e+00 : f32
    %35 = vector.broadcast %cst_19 : f32 to vector<8x1xf32>
    %36 = arith.subf %35, %28 : vector<8x1xf32>
    %37 = vector.broadcast %36 : vector<8x1xf32> to vector<8x2xf32>
    %38 = vector.broadcast %34 : vector<1x2xf32> to vector<8x2xf32>
    %39 = arith.mulf %37, %38 : vector<8x2xf32>
    %40 = math.exp %39 : vector<8x2xf32>
    %cst_20 = arith.constant 1.000000e+00 : f32
    %41 = vector.broadcast %cst_20 : f32 to vector<8x2xf32>
    %42 = arith.addf %41, %40 : vector<8x2xf32>
    %cst_21 = arith.constant 1.000000e+00 : f32
    %43 = vector.broadcast %cst_21 : f32 to vector<8x2xf32>
    %44 = arith.divf %43, %42 : vector<8x2xf32>
    %c0_22 = arith.constant 0 : index
    %c0_23 = arith.constant 0 : index
    %45 = vector.load %arg8[%c0_22, %c0_23] : memref<8x2xf32, #tpu.memory_space<vmem>>, vector<8x2xf32>
    tpu.vector_store %arg8[%c0_22, %c0_23], %44 {strides = array<i32>} : memref<8x2xf32, #tpu.memory_space<vmem>>, vector<8x2xf32>,
    return
  }
  func.func @transform_0(%arg0: i32) -> (i32, i32) {
    %c0_i32 = arith.constant 0 : i32
    %c0_i32_0 = arith.constant 0 : i32
    return %arg0, %c0_i32 : i32, i32
  }
  func.func @transform_1(%arg0: i32) -> (i32, i32) {
    %c0_i32 = arith.constant 0 : i32
    %c0_i32_0 = arith.constant 0 : i32
    %c0_i32_1 = arith.constant 0 : i32
    return %c0_i32, %c0_i32_0 : i32, i32
  }
  func.func @transform_2(%arg0: i32) -> (i32, i32) {
    %c0_i32 = arith.constant 0 : i32
    %c0_i32_0 = arith.constant 0 : i32
    %c0_i32_1 = arith.constant 0 : i32
    return %c0_i32, %c0_i32_0 : i32, i32
  }
  func.func @transform_3(%arg0: i32) -> (i32, i32) {
    %c0_i32 = arith.constant 0 : i32
    %c0_i32_0 = arith.constant 0 : i32
    %c0_i32_1 = arith.constant 0 : i32
    return %c0_i32, %c0_i32_0 : i32, i32
  }
  func.func @transform_4(%arg0: i32) -> (i32, i32) {
    %c0_i32 = arith.constant 0 : i32
    %c0_i32_0 = arith.constant 0 : i32
    %c0_i32_1 = arith.constant 0 : i32
    return %c0_i32, %c0_i32_0 : i32, i32
  }
  func.func @transform_5(%arg0: i32) -> (i32, i32) {
    %c0_i32 = arith.constant 0 : i32
    %c0_i32_0 = arith.constant 0 : i32
    %c0_i32_1 = arith.constant 0 : i32
    return %c0_i32, %c0_i32_0 : i32, i32
  }
  func.func @transform_6(%arg0: i32) -> (i32, i32) {
    %c0_i32 = arith.constant 0 : i32
    %c0_i32_0 = arith.constant 0 : i32
    %c0_i32_1 = arith.constant 0 : i32
    return %c0_i32, %c0_i32_0 : i32, i32
  }
  func.func @transform_7(%arg0: i32) -> (i32, i32) {
    %c0_i32 = arith.constant 0 : i32
    %c0_i32_0 = arith.constant 0 : i32
    return %arg0, %c0_i32 : i32, i32
  }
}

</mosaic_0001>

<llo_original>
// kernel: tpu_custom_call.1
$region0: #{tpu_custom_call.1}
  #allocation0 [shape = 'u32[]', space=smem, size = 0x4, offset = 0x4, fixed_abs, tag = 'smem constant byte address 0x4 - core index']
  #allocation1 [shape = 'u32[144,128]{1,0:T(1,128)}', space=vmem, size = 0x12000, scoped, tag = 'internal scratch']
  #allocation2 [shape = 'f32[1,1]{1,0:T(1,128)S(1)}', space=vmem, size = 0x200, scoped, tag = 'scoped memory for tpu_custom_call.1']
  %s0 = inlined_call_operand.hbm [shape: f32[8,40], index: 0, kind: input, shape index: {}]
  %s1 = inlined_call_operand.hbm [shape: bf16[40,256], index: 1, kind: input, shape index: {}]
  %s2 = inlined_call_operand.vmem [shape: f32[1,256], index: 2, kind: input, shape index: {}]
  %s3 = inlined_call_operand.hbm [shape: bf16[256,128], index: 3, kind: input, shape index: {}]
  %s4 = inlined_call_operand.vmem [shape: f32[1,128], index: 4, kind: input, shape index: {}]
  %s5 = inlined_call_operand.vmem [shape: f32[1,128], index: 5, kind: input, shape index: {}]
  %s6 = inlined_call_operand.<no memory space> [shape: f32[1,1], index: 6, kind: input, shape index: {}]
  %s7 = inlined_call_operand.vmem [shape: f32[8,2], index: 7, kind: output, shape index: {}]
  %s8 = sld [smem:[#allocation0]]
  $region50: #{tpu_custom_call.1} parent=0
    _
  %s10 = ssub.s32 1, %s8
  %s11 = scalar_select 0, %s10, %s8
  %v12 = vstv %s6
  %13 = vst [vmem:[#allocation2] sm:$0x1] %v12
  $region1: #{tpu_custom_call.1} parent=0
    #allocation3 [shape = 'u8[4096]{0}', space=vmem, size = 0x1000, scoped, tag = 'input window, operand 0, single buffered']
    #allocation4 [shape = 's32[1]{0}', space=sflag, size = 0x4, scoped, tag = 'scoped memory for tpu_custom_call.1']
    #allocation5 [shape = 'u8[20480]{0}', space=vmem, size = 0x5000, scoped, tag = 'input window, operand 1, single buffered']
    #allocation6 [shape = 's32[1]{0}', space=sflag, size = 0x4, scoped, tag = 'scoped memory for tpu_custom_call.1']
    #allocation7 [shape = 'u8[65536]{0}', space=vmem, size = 0x10000, scoped, tag = 'input window, operand 3, single buffered']
    %14 = vsyncpa [#allocation4], 0
    %15 = vsyncpa [#allocation6], 0
    // Predicated region
    $region2: #{tpu_custom_call.1} parent=1 // pred_check
      _
    $region3: #{tpu_custom_call.1} parent=1 // pred_check_branch
      %17 = sbr.rel (0) target = $region5
    $region4: #{tpu_custom_call.1} parent=1 // pred_region
      %s19 = ssub.s32 128, 128
      %20 = vsyncadd [#allocation4], %s19
      %s22 = sshll.u32 [#allocation3], 4
      %s23 = int_to_ptr.vmem [resolvable:$true] %s22
      %25 = dma.hbm_to_vmem [thread:$0]  %s0, 128, %s23, [#allocation4]
    $region5: #{tpu_custom_call.1} parent=1 // pred_fallthru
      _
    // Predicated region
    $region6: #{tpu_custom_call.1} parent=1 // pred_check
      _
    $region7: #{tpu_custom_call.1} parent=1 // pred_check_branch
      %27 = sbr.rel (0) target = $region9
    $region8: #{tpu_custom_call.1} parent=1 // pred_region
      %s29 = ssub.s32 640, 640
      %30 = vsyncadd [#allocation6], %s29
      %s31 = sshll.u32 [#allocation5], 4
      %s32 = int_to_ptr.vmem [resolvable:$true] %s31
      %37 = dma.hbm_to_vmem [thread:$0]  %s1, 640, %s32, [#allocation6], 128, 128, 8
    $region9: #{tpu_custom_call.1} parent=1 // pred_fallthru
      _
    // Predicated region
    $region10: #{tpu_custom_call.1} parent=1 // pred_check
      _
    $region11: #{tpu_custom_call.1} parent=1 // pred_check_branch
      %39 = sbr.rel (0) target = $region13
    $region12: #{tpu_custom_call.1} parent=1 // pred_region
      _
    $region13: #{tpu_custom_call.1} parent=1 // pred_fallthru
      _
    // Predicated region
    $region14: #{tpu_custom_call.1} parent=1 // pred_check
      _
    $region15: #{tpu_custom_call.1} parent=1 // pred_check_branch
      %41 = sbr.rel (0) target = $region17
    $region16: #{tpu_custom_call.1} parent=1 // pred_region
      %s43 = ssub.s32 2048, 2048
      %44 = vsyncadd [#allocation6], %s43
      %s45 = sshll.u32 [#allocation7], 4
      %s46 = int_to_ptr.vmem [resolvable:$true] %s45
      %51 = dma.hbm_to_vmem [thread:$0]  %s3, 2048, %s46, [#allocation6], 64, 64, 4
    $region17: #{tpu_custom_call.1} parent=1 // pred_fallthru
      _
    // Predicated region
    $region18: #{tpu_custom_call.1} parent=1 // pred_check
      _
    $region19: #{tpu_custom_call.1} parent=1 // pred_check_branch
      %53 = sbr.rel (0) target = $region21
    $region20: #{tpu_custom_call.1} parent=1 // pred_region
      _
    $region21: #{tpu_custom_call.1} parent=1 // pred_fallthru
      _
    // Predicated region
    $region22: #{tpu_custom_call.1} parent=1 // pred_check
      _
    $region23: #{tpu_custom_call.1} parent=1 // pred_check_branch
      %55 = sbr.rel (0) target = $region25
    $region24: #{tpu_custom_call.1} parent=1 // pred_region
      _
    $region25: #{tpu_custom_call.1} parent=1 // pred_fallthru
      _
    // Predicated region
    $region26: #{tpu_custom_call.1} parent=1 // pred_check
      _
    $region27: #{tpu_custom_call.1} parent=1 // pred_check_branch
      %57 = sbr.rel (0) target = $region29
    $region28: #{tpu_custom_call.1} parent=1 // pred_region
      _
    $region29: #{tpu_custom_call.1} parent=1 // pred_fallthru
      _
    // Predicated region
    $region30: #{tpu_custom_call.1} parent=1 // pred_check
      _
    $region31: #{tpu_custom_call.1} parent=1 // pred_check_branch
      %59 = sbr.rel (0) target = $region33
    $region32: #{tpu_custom_call.1} parent=1 // pred_region
      %60 = dma.done [#allocation4], 128
    $region33: #{tpu_custom_call.1} parent=1 // pred_fallthru
      _
    // Predicated region
    $region34: #{tpu_custom_call.1} parent=1 // pred_check
      _
    $region35: #{tpu_custom_call.1} parent=1 // pred_check_branch
      %62 = sbr.rel (0) target = $region37
    $region36: #{tpu_custom_call.1} parent=1 // pred_region
      %63 = dma.done [#allocation6], 640
    $region37: #{tpu_custom_call.1} parent=1 // pred_fallthru
      _
    // Predicated region
    $region38: #{tpu_custom_call.1} parent=1 // pred_check
      _
    $region39: #{tpu_custom_call.1} parent=1 // pred_check_branch
      %65 = sbr.rel (0) target = $region41
    $region40: #{tpu_custom_call.1} parent=1 // pred_region
      %66 = dma.done [#allocation6], 2048
    $region41: #{tpu_custom_call.1} parent=1 // pred_fallthru
      _
    %v68 = vld [vmem:[#allocation3] sm:$0xff]
    %v69 = vpack.c.bf16 %v68, %v68
    %v70 = vld [vmem:[#allocation5] sm:$0xff]
    %v71 = vld [vmem:[#allocation5 + $0x8] sm:$0xff]
    %v72 = vld [vmem:[#allocation5 + $0x10] sm:$0xff]
    %v73 = vld [vmem:[#allocation5 + $0x18] sm:$0xff]
    %v74 = vld [vmem:[#allocation5 + $0x20] sm:$0xff]
    %v75 = vld [vmem:[%s2] sm:$0x3]
    %v77 = vlaneseq
    %v78 = vshrl.u32 %v77, 7
    %v79 = vsub.s32 0, %v78
    %v80 = vrot.slane %v75, %v79
    %v81 = vlaneseq
    %v82 = vshrl.u32 %v81, 7
    %v83 = vsub.s32 1, %v82
    %v84 = vrot.slane %v75, %v83
    %v92 = vunpack.c.l.b16 %v70
    %v93 = vunpack.c.h.b16 %v70
    %v94 = vunpack.c.l.b16 %v71
    %v95 = vunpack.c.h.b16 %v71
    %v96 = vunpack.c.l.b16 %v72
    %v97 = vunpack.c.h.b16 %v72
    %v98 = vunpack.c.l.b16 %v73
    %v99 = vunpack.c.h.b16 %v73
    %v100 = vunpack.c.l.b16 %v74
    %v101 = vunpack.c.h.b16 %v74
    %v102 = vpack.c.b16 %v94, %v92
    %v103 = vpack.c.b16 %v95, %v93
    %v104 = vpack.c.b16 %v98, %v96
    %v105 = vpack.c.b16 %v99, %v97
    %v106 = vpack.c.b16 %v100, %v100
    %v107 = vpack.c.b16 %v101, %v101
    %vm112 = vcmask 326656
    %v114 = vsel %vm112, %v69, 0
    %vm116 = vcmask 1043456
    %v118 = vsel %vm116, %v106, 0
    %v121 = vsel %vm116, %v107, 0
    %123 = vmatprep.subr.bf16.mxu0 %v103
    %124 = vmatpush1.bf16.msra.mxu0 %v102
    %125 = vmatprep.subr.bf16.mxu0 %v105
    %126 = vmatpush1.bf16.msra.mxu0 %v104
    %127 = vmatprep.subr.bf16.mxu0 %v121
    %128 = vmatpush1.bf16.msra.mxu0 %v118
    %129 = vmatprep.subr.bf16.mxu0 0
    %130 = vmatpush1.bf16.msra.mxu0 0
    %131 = vmatprep.subr.bf16.mxu0 0
    %132 = vmatpush1.bf16.msra.mxu0 0
    %133 = vmatprep.subr.bf16.mxu0 0
    %134 = vmatpush1.bf16.msra.mxu0 0
    %135 = vmatprep.subr.bf16.mxu0 0
    %136 = vmatpush1.bf16.msra.mxu0 0
    %137 = vmatprep.subr.bf16.mxu0 0
    %138 = vmatpush1.bf16.msra.mxu0 0
    %139 = vmatprep.subr.bf16.mxu0 0
    %140 = vmatpush1.bf16.msra.mxu0 0
    %141 = vmatprep.subr.bf16.mxu0 0
    %142 = vmatpush1.bf16.msra.mxu0 0
    %143 = vmatprep.subr.bf16.mxu0 0
    %144 = vmatpush1.bf16.msra.mxu0 0
    %145 = vmatprep.subr.bf16.mxu0 0
    %146 = vmatpush1.bf16.msra.mxu0 0
    %147 = vmatprep.subr.bf16.mxu0 0
    %148 = vmatpush1.bf16.msra.mxu0 0
    %149 = vmatprep.subr.bf16.mxu0 0
    %150 = vmatpush1.bf16.msra.mxu0 0
    %151 = vmatprep.subr.bf16.mxu0 0
    %152 = vmatpush1.bf16.msra.mxu0 0
    %153 = vmatprep.subr.bf16.mxu0 0
    %154 = vmatpush1.bf16.msra.mxu0 0
    %155 = vmatprep.mubr.bf16.mxu0 0
    %156 = vmatmul.mubr.bf16.gmra.mrb[0].mxu0 %v114
    %v157 = vpop.f32.mrb[0].mxu0
    %v158 = vadd.f32 %v80, %v157
    %v159 = vpop.f32.mrb[0].mxu0
    %v160 = vadd.f32 %v84, %v159
    %v161 = vpop.f32.mrb[0].mxu0
    %v162 = vpop.f32.mrb[0].mxu0
    %163 = vdwg.mxu0
    %v164 = vmax.f32 %v158, -1.0
    %v165 = vmax.f32 %v160, -1.0
    %v166 = vmin.f32 %v164, 1.0
    %v167 = vmin.f32 %v165, 1.0
    %v168 = vpack.c.bf16 %v166, %v166
    %v169 = vpack.c.bf16 %v167, %v167
    %v170 = vld [vmem:[#allocation7] sm:$0xf]
    %v171 = vld [vmem:[#allocation7 + $0x4] sm:$0xf]
    %v172 = vld [vmem:[#allocation7 + $0x8] sm:$0xf]
    %v173 = vld [vmem:[#allocation7 + $0xc] sm:$0xf]
    %v174 = vld [vmem:[#allocation7 + $0x10] sm:$0xf]
    %v175 = vld [vmem:[#allocation7 + $0x14] sm:$0xf]
    %v176 = vld [vmem:[#allocation7 + $0x18] sm:$0xf]
    %v177 = vld [vmem:[#allocation7 + $0x1c] sm:$0xf]
    %v178 = vld [vmem:[#allocation7 + $0x20] sm:$0xf]
    %v179 = vld [vmem:[#allocation7 + $0x24] sm:$0xf]
    %v180 = vld [vmem:[#allocation7 + $0x28] sm:$0xf]
    %v181 = vld [vmem:[#allocation7 + $0x2c] sm:$0xf]
    %v182 = vld [vmem:[#allocation7 + $0x30] sm:$0xf]
    %v183 = vld [vmem:[#allocation7 + $0x34] sm:$0xf]
    %v184 = vld [vmem:[#allocation7 + $0x38] sm:$0xf]
    %v185 = vld [vmem:[#allocation7 + $0x3c] sm:$0xf]
    %v186 = vld [vmem:[#allocation7 + $0x40] sm:$0xf]
    %v187 = vld [vmem:[#allocation7 + $0x44] sm:$0xf]
    %v188 = vld [vmem:[#allocation7 + $0x48] sm:$0xf]
    %v189 = vld [vmem:[#allocation7 + $0x4c] sm:$0xf]
    %v190 = vld [vmem:[#allocation7 + $0x50] sm:$0xf]
    %v191 = vld [vmem:[#allocation7 + $0x54] sm:$0xf]
    %v192 = vld [vmem:[#allocation7 + $0x58] sm:$0xf]
    %v193 = vld [vmem:[#allocation7 + $0x5c] sm:$0xf]
    %v194 = vld [vmem:[#allocation7 + $0x60] sm:$0xf]
    %v195 = vld [vmem:[#allocation7 + $0x64] sm:$0xf]
    %v196 = vld [vmem:[#allocation7 + $0x68] sm:$0xf]
    %v197 = vld [vmem:[#allocation7 + $0x6c] sm:$0xf]
    %v198 = vld [vmem:[#allocation7 + $0x70] sm:$0xf]
    %v199 = vld [vmem:[#allocation7 + $0x74] sm:$0xf]
    %v200 = vld [vmem:[#allocation7 + $0x78] sm:$0xf]
    %v201 = vld [vmem:[#allocation7 + $0x7c] sm:$0xf]
    %v202 = vld [vmem:[%s4] sm:$0x1]
    %v204 = vlaneseq
    %v205 = vshrl.u32 %v204, 7
    %v206 = vsub.s32 0, %v205
    %v207 = vrot.slane %v202, %v206
    %v241 = vunpack.c.l.b16 %v170
    %v242 = vunpack.c.l.b16 %v171
    %v243 = vunpack.c.l.b16 %v172
    %v244 = vunpack.c.l.b16 %v173
    %v245 = vunpack.c.l.b16 %v174
    %v246 = vunpack.c.l.b16 %v175
    %v247 = vunpack.c.l.b16 %v176
    %v248 = vunpack.c.l.b16 %v177
    %v249 = vunpack.c.l.b16 %v178
    %v250 = vunpack.c.l.b16 %v179
    %v251 = vunpack.c.l.b16 %v180
    %v252 = vunpack.c.l.b16 %v181
    %v253 = vunpack.c.l.b16 %v182
    %v254 = vunpack.c.l.b16 %v183
    %v255 = vunpack.c.l.b16 %v184
    %v256 = vunpack.c.l.b16 %v185
    %v257 = vunpack.c.l.b16 %v186
    %v258 = vunpack.c.l.b16 %v187
    %v259 = vunpack.c.l.b16 %v188
    %v260 = vunpack.c.l.b16 %v189
    %v261 = vunpack.c.l.b16 %v190
    %v262 = vunpack.c.l.b16 %v191
    %v263 = vunpack.c.l.b16 %v192
    %v264 = vunpack.c.l.b16 %v193
    %v265 = vunpack.c.l.b16 %v194
    %v266 = vunpack.c.l.b16 %v195
    %v267 = vunpack.c.l.b16 %v196
    %v268 = vunpack.c.l.b16 %v197
    %v269 = vunpack.c.l.b16 %v198
    %v270 = vunpack.c.l.b16 %v199
    %v271 = vunpack.c.l.b16 %v200
    %v272 = vunpack.c.l.b16 %v201
    %v273 = vpack.c.b16 %v242, %v241
    %v274 = vpack.c.b16 %v244, %v243
    %v275 = vpack.c.b16 %v246, %v245
    %v276 = vpack.c.b16 %v248, %v247
    %v277 = vpack.c.b16 %v250, %v249
    %v278 = vpack.c.b16 %v252, %v251
    %v279 = vpack.c.b16 %v254, %v253
    %v280 = vpack.c.b16 %v256, %v255
    %v281 = vpack.c.b16 %v258, %v257
    %v282 = vpack.c.b16 %v260, %v259
    %v283 = vpack.c.b16 %v262, %v261
    %v284 = vpack.c.b16 %v264, %v263
    %v285 = vpack.c.b16 %v266, %v265
    %v286 = vpack.c.b16 %v268, %v267
    %v287 = vpack.c.b16 %v270, %v269
    %v288 = vpack.c.b16 %v272, %v271
    %305 = vmatprep.subr.bf16.mxu0 0
    %306 = vmatpush1.bf16.msra.mxu0 %v273
    %307 = vmatprep.subr.bf16.mxu0 0
    %308 = vmatpush1.bf16.msra.mxu0 %v274
    %309 = vmatprep.subr.bf16.mxu0 0
    %310 = vmatpush1.bf16.msra.mxu0 %v275
    %311 = vmatprep.subr.bf16.mxu0 0
    %312 = vmatpush1.bf16.msra.mxu0 %v276
    %313 = vmatprep.subr.bf16.mxu0 0
    %314 = vmatpush1.bf16.msra.mxu0 %v277
    %315 = vmatprep.subr.bf16.mxu0 0
    %316 = vmatpush1.bf16.msra.mxu0 %v278
    %317 = vmatprep.subr.bf16.mxu0 0
    %318 = vmatpush1.bf16.msra.mxu0 %v279
    %319 = vmatprep.subr.bf16.mxu0 0
    %320 = vmatpush1.bf16.msra.mxu0 %v280
    %321 = vmatprep.subr.bf16.mxu0 0
    %322 = vmatpush1.bf16.msra.mxu0 %v281
    %323 = vmatprep.subr.bf16.mxu0 0
    %324 = vmatpush1.bf16.msra.mxu0 %v282
    %325 = vmatprep.subr.bf16.mxu0 0
    %326 = vmatpush1.bf16.msra.mxu0 %v283
    %327 = vmatprep.subr.bf16.mxu0 0
    %328 = vmatpush1.bf16.msra.mxu0 %v284
    %329 = vmatprep.subr.bf16.mxu0 0
    %330 = vmatpush1.bf16.msra.mxu0 %v285
    %331 = vmatprep.subr.bf16.mxu0 0
    %332 = vmatpush1.bf16.msra.mxu0 %v286
    %333 = vmatprep.subr.bf16.mxu0 0
    %334 = vmatpush1.bf16.msra.mxu0 %v287
    %335 = vmatprep.subr.bf16.mxu0 0
    %336 = vmatpush1.bf16.msra.mxu0 %v288
    %337 = vmatprep.mubr.bf16.mxu0 %v169
    %338 = vmatmul.mubr.bf16.gmra.mrb[0].mxu0 %v168
    %v339 = vpop.f32.mrb[0].mxu0
    %v340 = vadd.f32 %v207, %v339
    %v341 = vpop.f32.mrb[0].mxu0
    %v342 = vpop.f32.mrb[0].mxu0
    %v343 = vpop.f32.mrb[0].mxu0
    %344 = vdwg.mxu0
    %v345 = vmax.f32 %v340, -1.0
    %v346 = vmin.f32 %v345, 1.0
    %v347 = vld [vmem:[%s5] sm:$0x1]
    %v349 = vlaneseq
    %v350 = vshrl.u32 %v349, 7
    %v351 = vsub.s32 0, %v350
    %v352 = vrot.slane %v347, %v351
    %v354 = vmul.f32 %v346, %v352
    %355 = vadd.xlane.f32.xlu0 %v354
    %v356 = vpop.xlane.xlu0 %355
    %v357 = vld [vmem:[#allocation2] sm:$0x1]
    %v359 = vlaneseq
    %v360 = vshrl.u32 %v359, 7
    %v361 = vsub.s32 0, %v360
    %v362 = vrot.slane %v357, %v361
    %v364 = vadd.f32 %v356, %v362
    %v365 = vlaneseq
    %v366 = vand.u32 %v365, 127
    %v367 = vmul.u32 %v366, 2
    %v368 = vsub.s32 %v367, 1
    %v369 = vcvt.s32.f32 %v368
    %v370 = vsub.f32 0.0, %v364
    %372 = vset.pattern.permute.xlu0 0
    %373 = vperm.xlu0 %372, %v370
    %v374 = vpop.permute.xlu0 %373
    %v376 = vmul.f32 %v374, %v369
    %v377 = vmul.f32 %v376, 1.442695
    %v378 = vpow.pop %v377
    %v379 = vadd.f32 %v378, 1.0
    %v380 = vrcp.pop %v379
    %v381 = vmul.f32 1.0, %v380
    %vm382 = vcmask 15360
    %383 = vst.msk [vmem:[%s7] sm:$0xff] %vm382, %v381
    // Predicated region
    $region42: #{tpu_custom_call.1} parent=1 // pred_check
      _
    $region43: #{tpu_custom_call.1} parent=1 // pred_check_branch
      %385 = sbr.rel (0) target = $region45
    $region44: #{tpu_custom_call.1} parent=1 // pred_region
      _
    $region45: #{tpu_custom_call.1} parent=1 // pred_fallthru
      _
    // Predicated region
    $region46: #{tpu_custom_call.1} parent=1 // pred_check
      _
    $region47: #{tpu_custom_call.1} parent=1 // pred_check_branch
      %387 = sbr.rel (0) target = $region49
    $region48: #{tpu_custom_call.1} parent=1 // pred_region
      _
    $region49: #{tpu_custom_call.1} parent=1 // pred_fallthru
      _
    %388 = vsyncpa [#allocation4], 1
    %389 = vsyncpa [#allocation6], 1

</llo_original>
